<compile_context>
chip_gen: v6e
topology: v6e:2x2x1
jax: 0.10.0
libtpu: 0.0.40
codegen_flags: <defaults>
</compile_context>

<pallas_src>
import jax
import jax.numpy as jnp
from jax.experimental import pallas as pl
from jax.experimental.pallas import tpu as pltpu

# Small deterministic problem sizes consistent with the module's usage
# (d_model = 32 feature dim, seq = 8, batch = 2, ffn hidden = 64).
B, S, D, DFF = 2, 8, 32, 64
BS = B * S
EPS = 1e-6  # LayerNorm eps from the module


def sublayer_output_kernel(x_ref, w1_ref, w2_ref, slab_ref, out_ref):
  f32 = jnp.float32
  x = x_ref[...]                        # [BS, D]
  slab = slab_ref[...]                  # [4, DFF] packed small params
  gamma = slab[0:1, :D]                 # [1, D]
  beta = slab[1:2, :D]                  # [1, D]
  b1 = slab[2:3, :DFF]                  # [1, DFF]
  b2 = slab[3:4, :D]                    # [1, D]

  # LayerNorm with the PyTorch module's exact semantics:
  #   a_2 * (x - mean) / (std + eps) + b_2, std unbiased (n-1 denominator).
  mu = jnp.mean(x, axis=-1, keepdims=True)
  xc = x - mu
  var = jnp.sum(xc * xc, axis=-1, keepdims=True) * (1.0 / (D - 1))
  inv = pl.reciprocal(jnp.sqrt(var) + EPS, approx=False)
  normed = gamma * (xc * inv) + beta

  # sublayer = position-wise feed-forward; dropout = identity (inference).
  h = jnp.maximum(
      jnp.dot(normed, w1_ref[...], preferred_element_type=f32) + b1, 0.0)
  f = jnp.dot(h, w2_ref[...], preferred_element_type=f32) + b2

  # Residual connection.
  out_ref[...] = x + f


def sublayer_output(x, w1, w2, slab):
  x2d = x.reshape(BS, D)                # fill sublanes with B*S rows
  vmem = pl.BlockSpec(memory_space=pltpu.MemorySpace.VMEM)
  out = pl.pallas_call(
      sublayer_output_kernel,
      out_shape=jax.ShapeDtypeStruct((BS, D), jnp.float32),
      in_specs=[vmem, vmem, vmem, vmem],
      out_specs=vmem,
  )(x2d, w1, w2, slab)
  return out.reshape(B, S, D)


def reference_forward(x, gamma, beta, w1, b1, w2, b2):
  mu = x.mean(-1, keepdims=True)
  xc = x - mu
  std = jnp.sqrt(jnp.sum(xc * xc, -1, keepdims=True) / (D - 1))  # unbiased std
  normed = gamma * xc / (std + EPS) + beta
  h = jnp.maximum(normed @ w1 + b1, 0.0)
  return x + (h @ w2 + b2)


if __name__ == "__main__":
  key = jax.random.PRNGKey(0)
  ks = jax.random.split(key, 8)

  x = jax.random.normal(ks[0], (B, S, D), jnp.float32)

  # LayerNorm parameters (perturbed away from the ones/zeros init so the
  # gamma/beta paths are actually exercised).
  gamma = 1.0 + 0.1 * jax.random.normal(ks[1], (D,), jnp.float32)
  beta = 0.1 * jax.random.normal(ks[2], (D,), jnp.float32)

  # Position-wise feed-forward sublayer parameters.
  w1 = 0.1 * jax.random.normal(ks[3], (D, DFF), jnp.float32)
  b1 = 0.1 * jax.random.normal(ks[4], (DFF,), jnp.float32)
  w2 = 0.1 * jax.random.normal(ks[5], (DFF, D), jnp.float32)
  b2 = 0.1 * jax.random.normal(ks[6], (D,), jnp.float32)

  # Pack all tiny params into a single lane-dense slab (one DMA descriptor).
  slab = jnp.zeros((4, DFF), jnp.float32)
  slab = slab.at[0, :D].set(gamma)
  slab = slab.at[1, :D].set(beta)
  slab = slab.at[2, :DFF].set(b1)
  slab = slab.at[3, :D].set(b2)

  out = jax.block_until_ready(sublayer_output(x, w1, w2, slab))
  ref = jax.block_until_ready(reference_forward(x, gamma, beta, w1, b1, w2, b2))

  assert out.shape == (B, S, D) and out.dtype == jnp.float32
  assert jnp.allclose(out, ref, atol=1e-4, rtol=1e-4), "kernel/reference mismatch"
  print("KERNEL_OK")
</pallas_src>

<mosaic_0001>
module attributes {stable_mosaic.version = 11 : i64} {
  func.func @sublayer_output_kernel(%arg0: memref<16x32xf32, #tpu.memory_space<vmem>>, %arg1: memref<32x64xf32, #tpu.memory_space<vmem>>, %arg2: memref<64x32xf32, #tpu.memory_space<vmem>>, %arg3: memref<4x64xf32, #tpu.memory_space<vmem>>, %arg4: memref<16x32xf32, #tpu.memory_space<vmem>>) attributes {dimension_semantics = [], scalar_prefetch = 0 : i64, scratch_operands = 0 : i64, tpu.core_type = #tpu.core_type<tc>} {
    %c0 = arith.constant 0 : index
    %c0_0 = arith.constant 0 : index
    %0 = vector.load %arg0[%c0, %c0_0] : memref<16x32xf32, #tpu.memory_space<vmem>>, vector<16x32xf32>
    %c0_1 = arith.constant 0 : index
    %c0_2 = arith.constant 0 : index
    %1 = vector.load %arg3[%c0_1, %c0_2] : memref<4x64xf32, #tpu.memory_space<vmem>>, vector<4x64xf32>
    %2 = vector.extract_strided_slice %1 {offsets = [0, 0], sizes = [1, 32], strides = [1, 1]} : vector<4x64xf32> to vector<1x32xf32>
    %3 = vector.extract_strided_slice %1 {offsets = [1, 0], sizes = [1, 32], strides = [1, 1]} : vector<4x64xf32> to vector<1x32xf32>
    %4 = vector.extract_strided_slice %1 {offsets = [2, 0], sizes = [1, 64], strides = [1, 1]} : vector<4x64xf32> to vector<1x64xf32>
    %5 = vector.extract_strided_slice %1 {offsets = [3, 0], sizes = [1, 32], strides = [1, 1]} : vector<4x64xf32> to vector<1x32xf32>
    %cst = arith.constant dense<0.000000e+00> : vector<16xf32>
    %6 = vector.multi_reduction <add>, %0, %cst [1] : vector<16x32xf32> to vector<16xf32>
    %7 = vector.shape_cast %6 : vector<16xf32> to vector<16x1xf32>
    %cst_3 = arith.constant 3.200000e+01 : f32
    %8 = vector.broadcast %cst_3 : f32 to vector<16x1xf32>
    %9 = arith.divf %7, %8 : vector<16x1xf32>
    %10 = vector.broadcast %9 : vector<16x1xf32> to vector<16x32xf32>
    %11 = arith.subf %0, %10 : vector<16x32xf32>
    %12 = arith.mulf %11, %11 : vector<16x32xf32>
    %cst_4 = arith.constant dense<0.000000e+00> : vector<16xf32>
    %13 = vector.multi_reduction <add>, %12, %cst_4 [1] : vector<16x32xf32> to vector<16xf32>
    %14 = vector.shape_cast %13 : vector<16xf32> to vector<16x1xf32>
    %cst_5 = arith.constant 0.0322580636 : f32
    %15 = vector.broadcast %cst_5 : f32 to vector<16x1xf32>
    %16 = arith.mulf %14, %15 : vector<16x1xf32>
    %17 = math.sqrt %16 : vector<16x1xf32>
    %cst_6 = arith.constant 9.99999997E-7 : f32
    %18 = vector.broadcast %cst_6 : f32 to vector<16x1xf32>
    %19 = arith.addf %17, %18 : vector<16x1xf32>
    %20 = tpu.reciprocal %19 : vector<16x1xf32> -> vector<16x1xf32>
    %21 = vector.broadcast %20 : vector<16x1xf32> to vector<16x32xf32>
    %22 = arith.mulf %11, %21 : vector<16x32xf32>
    %23 = vector.broadcast %2 : vector<1x32xf32> to vector<16x32xf32>
    %24 = arith.mulf %23, %22 : vector<16x32xf32>
    %25 = vector.broadcast %3 : vector<1x32xf32> to vector<16x32xf32>
    %26 = arith.addf %24, %25 : vector<16x32xf32>
    %c0_7 = arith.constant 0 : index
    %c0_8 = arith.constant 0 : index
    %27 = vector.load %arg1[%c0_7, %c0_8] : memref<32x64xf32, #tpu.memory_space<vmem>>, vector<32x64xf32>
    %cst_9 = arith.constant dense<0.000000e+00> : vector<16x64xf32>
    %28 = tpu.matmul %26, %27, %cst_9 {dimension_numbers = #tpu.dot_dimension_numbers<[1], [0], [0], [1], [0, 0, 1, 1], [], []>} : vector<16x32xf32>, vector<32x64xf32>, vector<16x64xf32> -> vector<16x64xf32>
    %29 = vector.broadcast %4 : vector<1x64xf32> to vector<16x64xf32>
    %30 = arith.addf %28, %29 : vector<16x64xf32>
    %cst_10 = arith.constant 0.000000e+00 : f32
    %31 = vector.broadcast %cst_10 : f32 to vector<16x64xf32>
    %32 = arith.maximumf %30, %31 : vector<16x64xf32>
    %c0_11 = arith.constant 0 : index
    %c0_12 = arith.constant 0 : index
    %33 = vector.load %arg2[%c0_11, %c0_12] : memref<64x32xf32, #tpu.memory_space<vmem>>, vector<64x32xf32>
    %cst_13 = arith.constant dense<0.000000e+00> : vector<16x32xf32>
    %34 = tpu.matmul %32, %33, %cst_13 {dimension_numbers = #tpu.dot_dimension_numbers<[1], [0], [0], [1], [0, 0, 1, 1], [], []>} : vector<16x64xf32>, vector<64x32xf32>, vector<16x32xf32> -> vector<16x32xf32>
    %35 = vector.broadcast %5 : vector<1x32xf32> to vector<16x32xf32>
    %36 = arith.addf %34, %35 : vector<16x32xf32>
    %37 = arith.addf %0, %36 : vector<16x32xf32>
    %c0_14 = arith.constant 0 : index
    %c0_15 = arith.constant 0 : index
    %38 = vector.load %arg4[%c0_14, %c0_15] : memref<16x32xf32, #tpu.memory_space<vmem>>, vector<16x32xf32>
    tpu.vector_store %arg4[%c0_14, %c0_15], %37 {strides = array<i32>} : memref<16x32xf32, #tpu.memory_space<vmem>>, vector<16x32xf32>,
    return
  }
}

</mosaic_0001>

<llo_original>
// kernel: tpu_custom_call.1
$region0: #{tpu_custom_call.1}
  #allocation0 [shape = 'u32[]', space=smem, size = 0x4, offset = 0x4, fixed_abs, tag = 'smem constant byte address 0x4 - core index']
  #allocation1 [shape = 'u32[144,128]{1,0:T(1,128)}', space=vmem, size = 0x12000, scoped, tag = 'internal scratch']
  %s0 = inlined_call_operand.vmem [shape: f32[16,32], index: 0, kind: input, shape index: {}]
  %s1 = inlined_call_operand.vmem [shape: f32[32,64], index: 1, kind: input, shape index: {}]
  %s2 = inlined_call_operand.vmem [shape: f32[64,32], index: 2, kind: input, shape index: {}]
  %s3 = inlined_call_operand.vmem [shape: f32[4,64], index: 3, kind: input, shape index: {}]
  %s4 = inlined_call_operand.hbm [shape: f32[16,32], index: 4, kind: output, shape index: {}]
  %s5 = sld [smem:[#allocation0]]
  $region26: #{tpu_custom_call.1} parent=0
    _
  %s7 = ssub.s32 1, %s5
  %s8 = scalar_select 0, %s7, %s5
  $region1: #{tpu_custom_call.1} parent=0
    #allocation2 [shape = 'u8[8192]{0}', space=vmem, size = 0x2000, scoped, tag = 'output window, operand 0, single buffered']
    #allocation3 [shape = 's32[1]{0}', space=sflag, size = 0x4, scoped, tag = 'scoped memory for tpu_custom_call.1']
    %9 = vsyncpa [#allocation3], 0
    // Predicated region
    $region2: #{tpu_custom_call.1} parent=1 // pred_check
      _
    $region3: #{tpu_custom_call.1} parent=1 // pred_check_branch
      %11 = sbr.rel (0) target = $region5
    $region4: #{tpu_custom_call.1} parent=1 // pred_region
      _
    $region5: #{tpu_custom_call.1} parent=1 // pred_fallthru
      _
    // Predicated region
    $region6: #{tpu_custom_call.1} parent=1 // pred_check
      _
    $region7: #{tpu_custom_call.1} parent=1 // pred_check_branch
      %13 = sbr.rel (0) target = $region9
    $region8: #{tpu_custom_call.1} parent=1 // pred_region
      _
    $region9: #{tpu_custom_call.1} parent=1 // pred_fallthru
      _
    // Predicated region
    $region10: #{tpu_custom_call.1} parent=1 // pred_check
      _
    $region11: #{tpu_custom_call.1} parent=1 // pred_check_branch
      %15 = sbr.rel (0) target = $region13
    $region12: #{tpu_custom_call.1} parent=1 // pred_region
      _
    $region13: #{tpu_custom_call.1} parent=1 // pred_fallthru
      _
    // Predicated region
    $region14: #{tpu_custom_call.1} parent=1 // pred_check
      _
    $region15: #{tpu_custom_call.1} parent=1 // pred_check_branch
      %17 = sbr.rel (0) target = $region17
    $region16: #{tpu_custom_call.1} parent=1 // pred_region
      _
    $region17: #{tpu_custom_call.1} parent=1 // pred_fallthru
      _
    %v18 = vld [vmem:[%s0] sm:$0xff]
    %v19 = vld [vmem:[%s0 + $0x8] sm:$0xff]
    %v20 = vld [vmem:[%s3] sm:$0xf]
    %vm21 = vcmask 261120
    %v22 = vsel %vm21, %v18, 0.0
    %23 = vadd.xlane.f32.xlu0 %v22
    %v24 = vpop.xlane.xlu0 %23
    %v25 = vsel %vm21, %v19, 0.0
    %26 = vadd.xlane.f32.xlu0 %v25
    %v27 = vpop.xlane.xlu0 %26
    %v28 = vrcp.pop 32.0
    %v29 = vmul.f32 %v24, %v28
    %v30 = vmul.f32 %v27, %v28
    %v31 = vsub.f32 %v18, %v29
    %v32 = vsub.f32 %v19, %v30
    %v33 = vmul.f32 %v31, %v31
    %v34 = vmul.f32 %v32, %v32
    %v35 = vsel %vm21, %v33, 0.0
    %36 = vadd.xlane.f32.xlu0 %v35
    %v37 = vpop.xlane.xlu0 %36
    %v38 = vsel %vm21, %v34, 0.0
    %39 = vadd.xlane.f32.xlu0 %v38
    %v40 = vpop.xlane.xlu0 %39
    %v41 = vmul.f32 %v37, 0.032258064
    %v42 = vmul.f32 %v40, 0.032258064
    %v43 = vrsqrt.pop %v41
    %v44 = vmul.f32 %v41, %v43
    %vm45 = vcmp.eq.f32.partialorder %v41, inf
    %v46 = vsel %vm45, %v41, %v44
    %vm47 = vcmp.eq.f32.partialorder %v41, 0.0
    %v48 = vand.u32 %v41, 2147483648
    %v49 = vsel %vm47, %v48, %v46
    %v50 = vrsqrt.pop %v42
    %v51 = vmul.f32 %v42, %v50
    %vm52 = vcmp.eq.f32.partialorder %v42, inf
    %v53 = vsel %vm52, %v42, %v51
    %vm54 = vcmp.eq.f32.partialorder %v42, 0.0
    %v55 = vand.u32 %v42, 2147483648
    %v56 = vsel %vm54, %v55, %v53
    %v57 = vadd.f32 %v49, 1e-06
    %v58 = vadd.f32 %v56, 1e-06
    %v59 = vrcp.pop %v57
    %v60 = vrcp.pop %v58
    %v61 = vmul.f32 %v31, %v59
    %v62 = vmul.f32 %v32, %v60
    %v63 = vlaneseq
    %v64 = vshrl.u32 %v63, 7
    %v65 = vsub.s32 0, %v64
    %v66 = vrot.slane %v20, %v65
    %v67 = vmul.f32 %v66, %v61
    %v68 = vmul.f32 %v66, %v62
    %v69 = vlaneseq
    %v70 = vshrl.u32 %v69, 7
    %v71 = vsub.s32 1, %v70
    %v72 = vrot.slane %v20, %v71
    %v73 = vadd.f32 %v67, %v72
    %v74 = vadd.f32 %v68, %v72
    %v75 = vld [vmem:[%s1] sm:$0xff]
    %v76 = vld [vmem:[%s1 + $0x8] sm:$0xff]
    %v77 = vld [vmem:[%s1 + $0x10] sm:$0xff]
    %v78 = vld [vmem:[%s1 + $0x18] sm:$0xff]
    %v79 = vlaneseq
    %v80 = vshrl.u32 %v79, 7
    %v81 = vsub.s32 2, %v80
    %v82 = vrot.slane %v20, %v81
    %v84 = vsel %vm21, %v73, 0
    %v87 = vsel %vm21, %v74, 0
    %89 = vmatprep.subr.mxu0 0.0
    %90 = vmatpush1.msra.mxu0 0.0
    %91 = vmatprep.subr.mxu0 0.0
    %92 = vmatpush1.msra.mxu0 0.0
    %93 = vmatprep.subr.mxu0 0.0
    %94 = vmatpush1.msra.mxu0 0.0
    %95 = vmatprep.subr.mxu0 0.0
    %96 = vmatpush1.msra.mxu0 0.0
    %97 = vmatprep.subr.mxu0 0.0
    %98 = vmatpush1.msra.mxu0 0.0
    %99 = vmatprep.subr.mxu0 0.0
    %100 = vmatpush1.msra.mxu0 0.0
    %101 = vmatprep.subr.mxu0 0.0
    %102 = vmatpush1.msra.mxu0 0.0
    %103 = vmatprep.subr.mxu0 0.0
    %104 = vmatpush1.msra.mxu0 0.0
    %105 = vmatprep.subr.mxu0 0.0
    %106 = vmatpush1.msra.mxu0 0.0
    %107 = vmatprep.subr.mxu0 0.0
    %108 = vmatpush1.msra.mxu0 0.0
    %109 = vmatprep.subr.mxu0 0.0
    %110 = vmatpush1.msra.mxu0 0.0
    %111 = vmatprep.subr.mxu0 0.0
    %112 = vmatpush1.msra.mxu0 0.0
    %113 = vmatprep.subr.mxu0 0.0
    %114 = vmatpush1.msra.mxu0 %v78
    %115 = vmatprep.subr.mxu0 0.0
    %116 = vmatpush1.msra.mxu0 %v77
    %117 = vmatprep.subr.mxu0 0.0
    %118 = vmatpush1.msra.mxu0 %v76
    %119 = vmatprep.subr.mxu0 0.0
    %120 = vmatpush1.msra.mxu0 %v75
    %121 = vmatprep.subr.mxu0 0.0
    %122 = vmatpush2.msra.mxu0 0.0
    %123 = vmatprep.subr.mxu0 0.0
    %124 = vmatpush2.msra.mxu0 0.0
    %125 = vmatprep.subr.mxu0 0.0
    %126 = vmatpush2.msra.mxu0 0.0
    %127 = vmatprep.subr.mxu0 0.0
    %128 = vmatpush2.msra.mxu0 0.0
    %129 = vmatprep.subr.mxu0 0.0
    %130 = vmatpush2.msra.mxu0 0.0
    %131 = vmatprep.subr.mxu0 0.0
    %132 = vmatpush2.msra.mxu0 0.0
    %133 = vmatprep.subr.mxu0 0.0
    %134 = vmatpush2.msra.mxu0 0.0
    %135 = vmatprep.subr.mxu0 0.0
    %136 = vmatpush2.msra.mxu0 0.0
    %137 = vmatprep.subr.mxu0 0.0
    %138 = vmatpush2.msra.mxu0 0.0
    %139 = vmatprep.subr.mxu0 0.0
    %140 = vmatpush2.msra.mxu0 0.0
    %141 = vmatprep.subr.mxu0 0.0
    %142 = vmatpush2.msra.mxu0 0.0
    %143 = vmatprep.subr.mxu0 0.0
    %144 = vmatpush2.msra.mxu0 0.0
    %145 = vmatprep.subr.mxu0 0.0
    %146 = vmatpush2.msra.mxu0 0.0
    %147 = vmatprep.subr.mxu0 0.0
    %148 = vmatpush2.msra.mxu0 0.0
    %149 = vmatprep.subr.mxu0 0.0
    %150 = vmatpush2.msra.mxu0 0.0
    %151 = vmatprep.subr.mxu0 0.0
    %152 = vmatpush2.msra.mxu0 0.0
    %153 = vmatprep.mubr.f32.mxu0 0.0
    %154 = vmatmul.mubr.f32.gmra.mxu0 %v84
    %v155 = vpop.f32.mrf.mxu0
    %v156 = vadd.f32 %v82, %v155
    %v157 = vpop.f32.mrf.mxu0
    %158 = vmatprep.mubr.f32.mxu0 0.0
    %159 = vmatmul.mubr.f32.gmra.mxu0 %v87
    %v160 = vpop.f32.mrf.mxu0
    %v161 = vadd.f32 %v82, %v160
    %v162 = vpop.f32.mrf.mxu0
    %163 = vdwg.mxu0
    %v164 = vmax.f32 %v156, 0.0
    %v165 = vmax.f32 %v161, 0.0
    %v166 = vld [vmem:[%s2] sm:$0xff]
    %v167 = vld [vmem:[%s2 + $0x8] sm:$0xff]
    %v168 = vld [vmem:[%s2 + $0x10] sm:$0xff]
    %v169 = vld [vmem:[%s2 + $0x18] sm:$0xff]
    %v170 = vld [vmem:[%s2 + $0x20] sm:$0xff]
    %v171 = vld [vmem:[%s2 + $0x28] sm:$0xff]
    %v172 = vld [vmem:[%s2 + $0x30] sm:$0xff]
    %v173 = vld [vmem:[%s2 + $0x38] sm:$0xff]
    %v174 = vlaneseq
    %v175 = vshrl.u32 %v174, 7
    %v176 = vsub.s32 3, %v175
    %v177 = vrot.slane %v20, %v176
    %vm178 = vcmask 523264
    %v180 = vsel %vm178, %v164, 0
    %v183 = vsel %vm178, %v165, 0
    %185 = vmatprep.subr.mxu0 0.0
    %186 = vmatpush1.msra.mxu0 0.0
    %187 = vmatprep.subr.mxu0 0.0
    %188 = vmatpush1.msra.mxu0 0.0
    %189 = vmatprep.subr.mxu0 0.0
    %190 = vmatpush1.msra.mxu0 0.0
    %191 = vmatprep.subr.mxu0 0.0
    %192 = vmatpush1.msra.mxu0 0.0
    %193 = vmatprep.subr.mxu0 0.0
    %194 = vmatpush1.msra.mxu0 0.0
    %195 = vmatprep.subr.mxu0 0.0
    %196 = vmatpush1.msra.mxu0 0.0
    %197 = vmatprep.subr.mxu0 0.0
    %198 = vmatpush1.msra.mxu0 0.0
    %199 = vmatprep.subr.mxu0 0.0
    %200 = vmatpush1.msra.mxu0 0.0
    %201 = vmatprep.subr.mxu0 0.0
    %202 = vmatpush1.msra.mxu0 %v173
    %203 = vmatprep.subr.mxu0 0.0
    %204 = vmatpush1.msra.mxu0 %v172
    %205 = vmatprep.subr.mxu0 0.0
    %206 = vmatpush1.msra.mxu0 %v171
    %207 = vmatprep.subr.mxu0 0.0
    %208 = vmatpush1.msra.mxu0 %v170
    %209 = vmatprep.subr.mxu0 0.0
    %210 = vmatpush1.msra.mxu0 %v169
    %211 = vmatprep.subr.mxu0 0.0
    %212 = vmatpush1.msra.mxu0 %v168
    %213 = vmatprep.subr.mxu0 0.0
    %214 = vmatpush1.msra.mxu0 %v167
    %215 = vmatprep.subr.mxu0 0.0
    %216 = vmatpush1.msra.mxu0 %v166
    %217 = vmatprep.subr.mxu0 0.0
    %218 = vmatpush2.msra.mxu0 0.0
    %219 = vmatprep.subr.mxu0 0.0
    %220 = vmatpush2.msra.mxu0 0.0
    %221 = vmatprep.subr.mxu0 0.0
    %222 = vmatpush2.msra.mxu0 0.0
    %223 = vmatprep.subr.mxu0 0.0
    %224 = vmatpush2.msra.mxu0 0.0
    %225 = vmatprep.subr.mxu0 0.0
    %226 = vmatpush2.msra.mxu0 0.0
    %227 = vmatprep.subr.mxu0 0.0
    %228 = vmatpush2.msra.mxu0 0.0
    %229 = vmatprep.subr.mxu0 0.0
    %230 = vmatpush2.msra.mxu0 0.0
    %231 = vmatprep.subr.mxu0 0.0
    %232 = vmatpush2.msra.mxu0 0.0
    %233 = vmatprep.subr.mxu0 0.0
    %234 = vmatpush2.msra.mxu0 0.0
    %235 = vmatprep.subr.mxu0 0.0
    %236 = vmatpush2.msra.mxu0 0.0
    %237 = vmatprep.subr.mxu0 0.0
    %238 = vmatpush2.msra.mxu0 0.0
    %239 = vmatprep.subr.mxu0 0.0
    %240 = vmatpush2.msra.mxu0 0.0
    %241 = vmatprep.subr.mxu0 0.0
    %242 = vmatpush2.msra.mxu0 0.0
    %243 = vmatprep.subr.mxu0 0.0
    %244 = vmatpush2.msra.mxu0 0.0
    %245 = vmatprep.subr.mxu0 0.0
    %246 = vmatpush2.msra.mxu0 0.0
    %247 = vmatprep.subr.mxu0 0.0
    %248 = vmatpush2.msra.mxu0 0.0
    %249 = vmatprep.mubr.f32.mxu0 0.0
    %250 = vmatmul.mubr.f32.gmra.mxu0 %v180
    %v251 = vpop.f32.mrf.mxu0
    %v252 = vadd.f32 %v177, %v251
    %v253 = vpop.f32.mrf.mxu0
    %254 = vmatprep.mubr.f32.mxu0 0.0
    %255 = vmatmul.mubr.f32.gmra.mxu0 %v183
    %v256 = vpop.f32.mrf.mxu0
    %v257 = vadd.f32 %v177, %v256
    %v258 = vpop.f32.mrf.mxu0
    %259 = vdwg.mxu0
    %v260 = vadd.f32 %v18, %v252
    %v261 = vadd.f32 %v19, %v257
    %262 = vst.msk [vmem:[#allocation2] sm:$0xff] %vm21, %v260
    %263 = vst.msk [vmem:[#allocation2 + $0x8] sm:$0xff] %vm21, %v261
    // Predicated region
    $region18: #{tpu_custom_call.1} parent=1 // pred_check
      _
    $region19: #{tpu_custom_call.1} parent=1 // pred_check_branch
      %265 = sbr.rel (0) target = $region21
    $region20: #{tpu_custom_call.1} parent=1 // pred_region
      %s267 = ssub.s32 256, 256
      %268 = vsyncadd [#allocation3], %s267
      %s269 = sshll.u32 [#allocation2], 4
      %s270 = int_to_ptr.vmem [resolvable:$true] %s269
      %275 = dma.vmem_to_hbm [thread:$0]  %s270, 256, %s4, [#allocation3], 128, 128, 8
    $region21: #{tpu_custom_call.1} parent=1 // pred_fallthru
      _
    // Predicated region
    $region22: #{tpu_custom_call.1} parent=1 // pred_check
      _
    $region23: #{tpu_custom_call.1} parent=1 // pred_check_branch
      %277 = sbr.rel (0) target = $region25
    $region24: #{tpu_custom_call.1} parent=1 // pred_region
      %278 = dma.done [#allocation3], 256
    $region25: #{tpu_custom_call.1} parent=1 // pred_fallthru
      _
    %279 = vsyncpa [#allocation3], 1

</llo_original>
